<compile_context>
chip_gen: v7x
topology: tpu7x:2x2x1
jax: 0.10.0
libtpu: 0.0.40
codegen_flags: <defaults>
</compile_context>

<pallas_src>
import functools

import jax
import jax.numpy as jnp
from jax.experimental import pallas as pl
from jax.experimental.pallas import tpu as pltpu


# ----------------------------------------------------------------------------
# Fused kernel: GCN stack + masked max-pool + out-MLP + classifier
# ----------------------------------------------------------------------------
def _fused_gcn_kernel(adj_ref, x_ref, maskb_ref,
                      w0_ref, b0_ref, wr_ref, br_ref,
                      wm_ref, bm_ref, wc_ref, bc_ref,
                      logits_ref, pooled_ref,
                      *, num_rest_layers):
    Bt, T, D = x_ref.shape
    H = w0_ref.shape[-1]

    adj = adj_ref[...]                                        # (Bt, T, T) bf16

    # Hoisted: denominator and its reciprocal, computed ONCE per batch tile
    # (not per layer).  Reciprocal goes to the EUP slot.
    denom = jnp.sum(adj.astype(jnp.float32), axis=-1, keepdims=True) + 1.0
    inv_denom = pl.reciprocal(denom, approx=True)             # (Bt, T, 1) f32

    def gcn_layer(h2d_bf16, w_bf16, b_f32):
        # xw = X @ W with M = Bt*T rows (fills the MXU M-dimension).
        xw = jnp.dot(h2d_bf16, w_bf16,
                     preferred_element_type=jnp.float32).reshape(Bt, T, H)
        # A @ (X W); the self-loop term reuses xw (reassociated form).
        axw = jnp.einsum('btk,bkh->bth', adj, xw.astype(jnp.bfloat16),
                         preferred_element_type=jnp.float32)
        # bias appears twice (Linear applied to both A@x and x in the ref).
        h = (axw + xw + 2.0 * b_f32) * inv_denom
        return jnp.maximum(h, 0.0)                            # (Bt, T, H) f32

    # Layer 0: D -> H
    x2d = x_ref[...].reshape(Bt * T, D)                       # bf16
    h = gcn_layer(x2d, w0_ref[...], b0_ref[...])

    # Remaining layers: H -> H (static unroll; layer count is small/static).
    for l in range(num_rest_layers):
        h2d = h.astype(jnp.bfloat16).reshape(Bt * T, H)
        h = gcn_layer(h2d, wr_ref[l], br_ref[l])

    # Masked max-pool over the sequence axis (fused; h never touches HBM).
    # maskb is an additive bias: 0 for valid tokens, -1e30 for padding
    # (equivalent to the reference masked_fill(-INF) before max).
    masked = h + maskb_ref[...]                               # (Bt, T, H)
    pooled = jnp.max(masked, axis=1)                          # (Bt, H)
    pooled_ref[...] = pooled

    # Output MLP (relu) + classifier, fused.  These matmuls are tiny; keep f32.
    hid = jnp.dot(pooled, wm_ref[...],
                  preferred_element_type=jnp.float32) + bm_ref[...]
    hid = jnp.maximum(hid, 0.0)
    logits_ref[...] = jnp.dot(hid, wc_ref[...],
                              preferred_element_type=jnp.float32) + bc_ref[...]


def _pick_batch_tile(B, T, D, H):
    """Pick the batch tile Bt: as many batch rows per grid step as comfortably
    fit a conservative VMEM budget (double-buffered bf16 adj/x blocks dominate).
    Bt is either the full batch or a multiple of 8 dividing B, so that the 2-D
    (Bt, ...) output blocks stay layout-legal."""
    def step_bytes(bt):
        # 2x for double buffering of bf16 adj + x, plus f32 intermediates.
        return 2 * 2 * bt * T * (T + D) + 4 * 4 * bt * T * H

    budget = 24 * 1024 * 1024
    if step_bytes(B) <= budget:
        return B
    start = B - (B % 8)
    for bt in range(start, 0, -8):
        if B % bt == 0 and step_bytes(bt) <= budget:
            return bt
    return B  # fallback: whole batch (may be VMEM-tight for huge T)


def fused_gcn_classifier(adj_bf, x_bf, mask_bias,
                         w0, b0, wr, br, wm, bm, wc, bc,
                         *, num_rest_layers):
    B, T, D = x_bf.shape
    H = w0.shape[-1]
    C = wc.shape[-1]
    Lr = wr.shape[0]

    Bt = _pick_batch_tile(B, T, D, H)
    assert B % Bt == 0
    grid = (B // Bt,)

    kernel = functools.partial(_fused_gcn_kernel, num_rest_layers=num_rest_layers)

    return pl.pallas_call(
        kernel,
        out_shape=(
            jax.ShapeDtypeStruct((B, C), jnp.float32),   # logits
            jax.ShapeDtypeStruct((B, H), jnp.float32),   # pooling_output
        ),
        grid=grid,
        in_specs=[
            pl.BlockSpec((Bt, T, T), lambda bi: (bi, 0, 0)),   # adj   (bf16)
            pl.BlockSpec((Bt, T, D), lambda bi: (bi, 0, 0)),   # x     (bf16)
            pl.BlockSpec((Bt, T, 1), lambda bi: (bi, 0, 0)),   # mask bias (f32)
            pl.BlockSpec((D, H), lambda bi: (0, 0)),           # gcn W0 (bf16)
            pl.BlockSpec((1, H), lambda bi: (0, 0)),           # gcn b0 (f32)
            pl.BlockSpec((Lr, H, H), lambda bi: (0, 0, 0)),    # stacked rest W
            pl.BlockSpec((Lr, 1, H), lambda bi: (0, 0, 0)),    # stacked rest b
            pl.BlockSpec((H, H), lambda bi: (0, 0)),           # w_mlp
            pl.BlockSpec((1, H), lambda bi: (0, 0)),           # b_mlp
            pl.BlockSpec((H, C), lambda bi: (0, 0)),           # w_cls
            pl.BlockSpec((1, C), lambda bi: (0, 0)),           # b_cls
        ],
        out_specs=(
            pl.BlockSpec((Bt, C), lambda bi: (bi, 0)),
            pl.BlockSpec((Bt, H), lambda bi: (bi, 0)),
        ),
        compiler_params=pltpu.CompilerParams(
            dimension_semantics=("parallel",),        # batch tiles -> both TCs on v7x
            vmem_limit_bytes=32 * 1024 * 1024,        # explicit, safe on v5e/v6e/v7x
        ),
    )(adj_bf, x_bf, mask_bias, w0, b0, wr, br, wm, bm, wc, bc)


# ----------------------------------------------------------------------------
# Full forward (GCNClassifier.forward equivalent)
# ----------------------------------------------------------------------------
def gcn_classifier_forward(params, tokens, adj, mask):
    # Embedding gather (glue; not the hot path).
    x = jnp.take(params["emb"], tokens, axis=0)                # (B, T, D) f32

    # Narrow the MXU operands: 0/1 adjacency is exact in bf16; activations and
    # GCN weights go bf16 too (f32 accumulation inside the kernel).
    adj_bf = adj.astype(jnp.bfloat16)
    x_bf = x.astype(jnp.bfloat16)
    w0 = params["gcn_w0"].astype(jnp.bfloat16)
    wr = params["gcn_wr"].astype(jnp.bfloat16)

    # Additive pooling bias: 0 for valid tokens, -1e30 for padding.
    # (If a row is entirely padded the pooled vector is -1e30, mirroring the
    # reference masked_fill behavior.)
    mask_bias = jnp.where(mask > 0.0, 0.0, -1e30).astype(jnp.float32)[:, :, None]

    logits, pooled = fused_gcn_classifier(
        adj_bf, x_bf, mask_bias,
        w0, params["gcn_b0"], wr, params["gcn_br"],
        params["w_mlp"], params["b_mlp"], params["w_cls"], params["b_cls"],
        num_rest_layers=params["num_rest_layers"],
    )
    # GCNClassifier returns (logits, pooling_output): pooling_output is the
    # sentence-level pooled GCN representation.
    return logits, pooled


def init_params(key, vocab, emb_dim, hidden_dim, num_layers, num_class):
    assert num_layers >= 1
    num_rest = num_layers - 1
    lr = max(num_rest, 1)                       # keep a non-empty (dummy) stack
    keys = jax.random.split(key, 4 + lr)

    params = {}
    params["emb"] = jax.random.normal(keys[0], (vocab, emb_dim), jnp.float32) * 0.1
    params["gcn_w0"] = jax.random.normal(keys[1], (emb_dim, hidden_dim), jnp.float32) * 0.1
    params["gcn_b0"] = jnp.zeros((1, hidden_dim), jnp.float32)
    wr = [jax.random.normal(keys[2 + l], (hidden_dim, hidden_dim), jnp.float32) * 0.1
          for l in range(lr)]
    params["gcn_wr"] = jnp.stack(wr, axis=0)                   # (Lr, H, H)
    params["gcn_br"] = jnp.zeros((lr, 1, hidden_dim), jnp.float32)
    params["num_rest_layers"] = num_rest
    params["w_mlp"] = jax.random.normal(keys[-2], (hidden_dim, hidden_dim), jnp.float32) * 0.1
    params["b_mlp"] = jnp.zeros((1, hidden_dim), jnp.float32)
    params["w_cls"] = jax.random.normal(keys[-1], (hidden_dim, num_class), jnp.float32) * 0.1
    params["b_cls"] = jnp.zeros((1, num_class), jnp.float32)
    return params


if __name__ == "__main__":
    B, T = 2, 8
    VOCAB, EMB, HID, LAYERS, NCLASS = 50, 32, 32, 2, 4

    root = jax.random.PRNGKey(0)
    kp, kt, ka = jax.random.split(root, 3)

    params = init_params(kp, VOCAB, EMB, HID, LAYERS, NCLASS)

    tokens = jax.random.randint(kt, (B, T), 0, VOCAB)
    # Deterministic symmetric 0/1 adjacency; self-loop handled inside the kernel.
    a = (jax.random.uniform(ka, (B, T, T)) > 0.6).astype(jnp.float32)
    adj = jnp.maximum(a, jnp.transpose(a, (0, 2, 1)))
    # First 6 tokens valid, last 2 padded (1 = valid, 0 = pad).
    mask = jnp.broadcast_to(jnp.arange(T)[None, :] < 6, (B, T)).astype(jnp.float32)

    logits, pooling_output = gcn_classifier_forward(params, tokens, adj, mask)
    jax.block_until_ready((logits, pooling_output))

    assert logits.shape == (B, NCLASS)
    assert pooling_output.shape == (B, HID)
    print("KERNEL_OK")
</pallas_src>

<mosaic_0001>
module attributes {stable_mosaic.version = 11 : i64} {
  func.func @_fused_gcn_kernel(%arg0: i32, %arg1: memref<2x8x8xbf16, #tpu.memory_space<vmem>>, %arg2: memref<2x8x32xbf16, #tpu.memory_space<vmem>>, %arg3: memref<2x8x1xf32, #tpu.memory_space<vmem>>, %arg4: memref<32x32xbf16, #tpu.memory_space<vmem>>, %arg5: memref<1x32xf32, #tpu.memory_space<vmem>>, %arg6: memref<1x32x32xbf16, #tpu.memory_space<vmem>>, %arg7: memref<1x1x32xf32, #tpu.memory_space<vmem>>, %arg8: memref<32x32xf32, #tpu.memory_space<vmem>>, %arg9: memref<1x32xf32, #tpu.memory_space<vmem>>, %arg10: memref<32x4xf32, #tpu.memory_space<vmem>>, %arg11: memref<1x4xf32, #tpu.memory_space<vmem>>, %arg12: memref<2x4xf32, #tpu.memory_space<vmem>>, %arg13: memref<2x32xf32, #tpu.memory_space<vmem>>) attributes {dimension_semantics = [#tpu.dimension_semantics<parallel>], iteration_bounds = array<i64: 1>, scalar_prefetch = 0 : i64, scratch_operands = 0 : i64, tpu.core_type = #tpu.core_type<tc>, window_params = [{transform_indices = @transform_0, window_bounds = array<i64: 2, 8, 8>}, {transform_indices = @transform_1, window_bounds = array<i64: 2, 8, 32>}, {transform_indices = @transform_2, window_bounds = array<i64: 2, 8, 1>}, {pipeline_mode = #tpu.pipeline_mode<synchronous>, transform_indices = @transform_3, window_bounds = array<i64: 32, 32>}, {pipeline_mode = #tpu.pipeline_mode<synchronous>, transform_indices = @transform_4, window_bounds = array<i64: 1, 32>}, {pipeline_mode = #tpu.pipeline_mode<synchronous>, transform_indices = @transform_5, window_bounds = array<i64: 1, 32, 32>}, {pipeline_mode = #tpu.pipeline_mode<synchronous>, transform_indices = @transform_6, window_bounds = array<i64: 1, 1, 32>}, {pipeline_mode = #tpu.pipeline_mode<synchronous>, transform_indices = @transform_7, window_bounds = array<i64: 32, 32>}, {pipeline_mode = #tpu.pipeline_mode<synchronous>, transform_indices = @transform_8, window_bounds = array<i64: 1, 32>}, {pipeline_mode = #tpu.pipeline_mode<synchronous>, transform_indices = @transform_9, window_bounds = array<i64: 32, 4>}, {pipeline_mode = #tpu.pipeline_mode<synchronous>, transform_indices = @transform_10, window_bounds = array<i64: 1, 4>}, {transform_indices = @transform_11, window_bounds = array<i64: 2, 4>}, {transform_indices = @transform_12, window_bounds = array<i64: 2, 32>}]} {
    %c0 = arith.constant 0 : index
    %c0_0 = arith.constant 0 : index
    %c0_1 = arith.constant 0 : index
    %0 = vector.load %arg1[%c0, %c0_0, %c0_1] : memref<2x8x8xbf16, #tpu.memory_space<vmem>>, vector<2x8x8xbf16>
    %1 = arith.extf %0 : vector<2x8x8xbf16> to vector<2x8x8xf32>
    %cst = arith.constant dense<0.000000e+00> : vector<2x8xf32>
    %2 = vector.multi_reduction <add>, %1, %cst [2] : vector<2x8x8xf32> to vector<2x8xf32>
    %3 = vector.shape_cast %2 : vector<2x8xf32> to vector<2x8x1xf32>
    %cst_2 = arith.constant 1.000000e+00 : f32
    %4 = vector.broadcast %cst_2 : f32 to vector<2x8x1xf32>
    %5 = arith.addf %3, %4 : vector<2x8x1xf32>
    %6 = tpu.reciprocal %5 {approx = true} : vector<2x8x1xf32> -> vector<2x8x1xf32>
    %c0_3 = arith.constant 0 : index
    %c0_4 = arith.constant 0 : index
    %c0_5 = arith.constant 0 : index
    %7 = vector.load %arg2[%c0_3, %c0_4, %c0_5] : memref<2x8x32xbf16, #tpu.memory_space<vmem>>, vector<2x8x32xbf16>
    %8 = vector.shape_cast %7 : vector<2x8x32xbf16> to vector<16x32xbf16>
    %c0_6 = arith.constant 0 : index
    %c0_7 = arith.constant 0 : index
    %9 = vector.load %arg4[%c0_6, %c0_7] : memref<32x32xbf16, #tpu.memory_space<vmem>>, vector<32x32xbf16>
    %c0_8 = arith.constant 0 : index
    %c0_9 = arith.constant 0 : index
    %10 = vector.load %arg5[%c0_8, %c0_9] : memref<1x32xf32, #tpu.memory_space<vmem>>, vector<1x32xf32>
    %cst_10 = arith.constant dense<0.000000e+00> : vector<16x32xf32>
    %11 = tpu.matmul %8, %9, %cst_10 {dimension_numbers = #tpu.dot_dimension_numbers<[1], [0], [0], [1], [0, 0, 1, 1], [], []>} : vector<16x32xbf16>, vector<32x32xbf16>, vector<16x32xf32> -> vector<16x32xf32>
    %12 = vector.shape_cast %11 : vector<16x32xf32> to vector<2x8x32xf32>
    %13 = arith.truncf %12 : vector<2x8x32xf32> to vector<2x8x32xbf16>
    "tpu.trace_start"() <{level = 10 : i32, message = "btk,bkh->bth"}> : () -> ()
    %cst_11 = arith.constant dense<0.000000e+00> : vector<2x8x32xf32>
    %14 = tpu.matmul %0, %13, %cst_11 {dimension_numbers = #tpu.dot_dimension_numbers<[2], [1], [1], [2], [0, 0, 0, 1, 1, 2], [0], [0]>} : vector<2x8x8xbf16>, vector<2x8x32xbf16>, vector<2x8x32xf32> -> vector<2x8x32xf32>
    "tpu.trace_stop"() : () -> ()
    %15 = arith.addf %14, %12 : vector<2x8x32xf32>
    %cst_12 = arith.constant 2.000000e+00 : f32
    %16 = vector.broadcast %cst_12 : f32 to vector<1x32xf32>
    %17 = arith.mulf %16, %10 : vector<1x32xf32>
    %18 = vector.shape_cast %17 : vector<1x32xf32> to vector<1x1x32xf32>
    %19 = vector.broadcast %18 : vector<1x1x32xf32> to vector<2x8x32xf32>
    %20 = arith.addf %15, %19 : vector<2x8x32xf32>
    %21 = vector.broadcast %6 : vector<2x8x1xf32> to vector<2x8x32xf32>
    %22 = arith.mulf %20, %21 : vector<2x8x32xf32>
    %cst_13 = arith.constant 0.000000e+00 : f32
    %23 = vector.broadcast %cst_13 : f32 to vector<2x8x32xf32>
    %24 = arith.maximumf %22, %23 : vector<2x8x32xf32>
    %25 = arith.truncf %24 : vector<2x8x32xf32> to vector<2x8x32xbf16>
    %26 = vector.shape_cast %25 : vector<2x8x32xbf16> to vector<16x32xbf16>
    %c0_14 = arith.constant 0 : index
    %c0_15 = arith.constant 0 : index
    %c0_16 = arith.constant 0 : index
    %27 = vector.load %arg6[%c0_14, %c0_15, %c0_16] : memref<1x32x32xbf16, #tpu.memory_space<vmem>>, vector<1x32x32xbf16>
    %28 = vector.shape_cast %27 : vector<1x32x32xbf16> to vector<32x32xbf16>
    %c0_17 = arith.constant 0 : index
    %c0_18 = arith.constant 0 : index
    %c0_19 = arith.constant 0 : index
    %29 = vector.load %arg7[%c0_17, %c0_18, %c0_19] : memref<1x1x32xf32, #tpu.memory_space<vmem>>, vector<1x1x32xf32>
    %30 = vector.shape_cast %29 : vector<1x1x32xf32> to vector<1x32xf32>
    %cst_20 = arith.constant dense<0.000000e+00> : vector<16x32xf32>
    %31 = tpu.matmul %26, %28, %cst_20 {dimension_numbers = #tpu.dot_dimension_numbers<[1], [0], [0], [1], [0, 0, 1, 1], [], []>} : vector<16x32xbf16>, vector<32x32xbf16>, vector<16x32xf32> -> vector<16x32xf32>
    %32 = vector.shape_cast %31 : vector<16x32xf32> to vector<2x8x32xf32>
    %33 = arith.truncf %32 : vector<2x8x32xf32> to vector<2x8x32xbf16>
    "tpu.trace_start"() <{level = 10 : i32, message = "btk,bkh->bth"}> : () -> ()
    %cst_21 = arith.constant dense<0.000000e+00> : vector<2x8x32xf32>
    %34 = tpu.matmul %0, %33, %cst_21 {dimension_numbers = #tpu.dot_dimension_numbers<[2], [1], [1], [2], [0, 0, 0, 1, 1, 2], [0], [0]>} : vector<2x8x8xbf16>, vector<2x8x32xbf16>, vector<2x8x32xf32> -> vector<2x8x32xf32>
    "tpu.trace_stop"() : () -> ()
    %35 = arith.addf %34, %32 : vector<2x8x32xf32>
    %cst_22 = arith.constant 2.000000e+00 : f32
    %36 = vector.broadcast %cst_22 : f32 to vector<1x32xf32>
    %37 = arith.mulf %36, %30 : vector<1x32xf32>
    %38 = vector.shape_cast %37 : vector<1x32xf32> to vector<1x1x32xf32>
    %39 = vector.broadcast %38 : vector<1x1x32xf32> to vector<2x8x32xf32>
    %40 = arith.addf %35, %39 : vector<2x8x32xf32>
    %41 = vector.broadcast %6 : vector<2x8x1xf32> to vector<2x8x32xf32>
    %42 = arith.mulf %40, %41 : vector<2x8x32xf32>
    %cst_23 = arith.constant 0.000000e+00 : f32
    %43 = vector.broadcast %cst_23 : f32 to vector<2x8x32xf32>
    %44 = arith.maximumf %42, %43 : vector<2x8x32xf32>
    %c0_24 = arith.constant 0 : index
    %c0_25 = arith.constant 0 : index
    %c0_26 = arith.constant 0 : index
    %45 = vector.load %arg3[%c0_24, %c0_25, %c0_26] : memref<2x8x1xf32, #tpu.memory_space<vmem>>, vector<2x8x1xf32>
    %46 = vector.broadcast %45 : vector<2x8x1xf32> to vector<2x8x32xf32>
    %47 = arith.addf %44, %46 : vector<2x8x32xf32>
    %cst_27 = arith.constant dense<0xFF800000> : vector<2x32xf32>
    %48 = vector.multi_reduction <maximumf>, %47, %cst_27 [1] : vector<2x8x32xf32> to vector<2x32xf32>
    %c0_28 = arith.constant 0 : index
    %c0_29 = arith.constant 0 : index
    %49 = vector.load %arg13[%c0_28, %c0_29] : memref<2x32xf32, #tpu.memory_space<vmem>>, vector<2x32xf32>
    tpu.vector_store %arg13[%c0_28, %c0_29], %48 {strides = array<i32>} : memref<2x32xf32, #tpu.memory_space<vmem>>, vector<2x32xf32>,
    %c0_30 = arith.constant 0 : index
    %c0_31 = arith.constant 0 : index
    %50 = vector.load %arg8[%c0_30, %c0_31] : memref<32x32xf32, #tpu.memory_space<vmem>>, vector<32x32xf32>
    %cst_32 = arith.constant dense<0.000000e+00> : vector<2x32xf32>
    %51 = tpu.matmul %48, %50, %cst_32 {dimension_numbers = #tpu.dot_dimension_numbers<[1], [0], [0], [1], [0, 0, 1, 1], [], []>} : vector<2x32xf32>, vector<32x32xf32>, vector<2x32xf32> -> vector<2x32xf32>
    %c0_33 = arith.constant 0 : index
    %c0_34 = arith.constant 0 : index
    %52 = vector.load %arg9[%c0_33, %c0_34] : memref<1x32xf32, #tpu.memory_space<vmem>>, vector<1x32xf32>
    %53 = vector.broadcast %52 : vector<1x32xf32> to vector<2x32xf32>
    %54 = arith.addf %51, %53 : vector<2x32xf32>
    %cst_35 = arith.constant 0.000000e+00 : f32
    %55 = vector.broadcast %cst_35 : f32 to vector<2x32xf32>
    %56 = arith.maximumf %54, %55 : vector<2x32xf32>
    %c0_36 = arith.constant 0 : index
    %c0_37 = arith.constant 0 : index
    %57 = vector.load %arg10[%c0_36, %c0_37] : memref<32x4xf32, #tpu.memory_space<vmem>>, vector<32x4xf32>
    %cst_38 = arith.constant dense<0.000000e+00> : vector<2x4xf32>
    %58 = tpu.matmul %56, %57, %cst_38 {dimension_numbers = #tpu.dot_dimension_numbers<[1], [0], [0], [1], [0, 0, 1, 1], [], []>} : vector<2x32xf32>, vector<32x4xf32>, vector<2x4xf32> -> vector<2x4xf32>
    %c0_39 = arith.constant 0 : index
    %c0_40 = arith.constant 0 : index
    %59 = vector.load %arg11[%c0_39, %c0_40] : memref<1x4xf32, #tpu.memory_space<vmem>>, vector<1x4xf32>
    %60 = vector.broadcast %59 : vector<1x4xf32> to vector<2x4xf32>
    %61 = arith.addf %58, %60 : vector<2x4xf32>
    %c0_41 = arith.constant 0 : index
    %c0_42 = arith.constant 0 : index
    %62 = vector.load %arg12[%c0_41, %c0_42] : memref<2x4xf32, #tpu.memory_space<vmem>>, vector<2x4xf32>
    tpu.vector_store %arg12[%c0_41, %c0_42], %61 {strides = array<i32>} : memref<2x4xf32, #tpu.memory_space<vmem>>, vector<2x4xf32>,
    return
  }
  func.func @transform_0(%arg0: i32) -> (i32, i32, i32) {
    %c0_i32 = arith.constant 0 : i32
    %c0_i32_0 = arith.constant 0 : i32
    %c0_i32_1 = arith.constant 0 : i32
    return %arg0, %c0_i32, %c0_i32_0 : i32, i32, i32
  }
  func.func @transform_1(%arg0: i32) -> (i32, i32, i32) {
    %c0_i32 = arith.constant 0 : i32
    %c0_i32_0 = arith.constant 0 : i32
    %c0_i32_1 = arith.constant 0 : i32
    return %arg0, %c0_i32, %c0_i32_0 : i32, i32, i32
  }
  func.func @transform_2(%arg0: i32) -> (i32, i32, i32) {
    %c0_i32 = arith.constant 0 : i32
    %c0_i32_0 = arith.constant 0 : i32
    %c0_i32_1 = arith.constant 0 : i32
    return %arg0, %c0_i32, %c0_i32_0 : i32, i32, i32
  }
  func.func @transform_3(%arg0: i32) -> (i32, i32) {
    %c0_i32 = arith.constant 0 : i32
    %c0_i32_0 = arith.constant 0 : i32
    %c0_i32_1 = arith.constant 0 : i32
    return %c0_i32, %c0_i32_0 : i32, i32
  }
  func.func @transform_4(%arg0: i32) -> (i32, i32) {
    %c0_i32 = arith.constant 0 : i32
    %c0_i32_0 = arith.constant 0 : i32
    %c0_i32_1 = arith.constant 0 : i32
    return %c0_i32, %c0_i32_0 : i32, i32
  }
  func.func @transform_5(%arg0: i32) -> (i32, i32, i32) {
    %c0_i32 = arith.constant 0 : i32
    %c0_i32_0 = arith.constant 0 : i32
    %c0_i32_1 = arith.constant 0 : i32
    %c0_i32_2 = arith.constant 0 : i32
    return %c0_i32, %c0_i32_0, %c0_i32_1 : i32, i32, i32
  }
  func.func @transform_6(%arg0: i32) -> (i32, i32, i32) {
    %c0_i32 = arith.constant 0 : i32
    %c0_i32_0 = arith.constant 0 : i32
    %c0_i32_1 = arith.constant 0 : i32
    %c0_i32_2 = arith.constant 0 : i32
    return %c0_i32, %c0_i32_0, %c0_i32_1 : i32, i32, i32
  }
  func.func @transform_7(%arg0: i32) -> (i32, i32) {
    %c0_i32 = arith.constant 0 : i32
    %c0_i32_0 = arith.constant 0 : i32
    %c0_i32_1 = arith.constant 0 : i32
    return %c0_i32, %c0_i32_0 : i32, i32
  }
  func.func @transform_8(%arg0: i32) -> (i32, i32) {
    %c0_i32 = arith.constant 0 : i32
    %c0_i32_0 = arith.constant 0 : i32
    %c0_i32_1 = arith.constant 0 : i32
    return %c0_i32, %c0_i32_0 : i32, i32
  }
  func.func @transform_9(%arg0: i32) -> (i32, i32) {
    %c0_i32 = arith.constant 0 : i32
    %c0_i32_0 = arith.constant 0 : i32
    %c0_i32_1 = arith.constant 0 : i32
    return %c0_i32, %c0_i32_0 : i32, i32
  }
  func.func @transform_10(%arg0: i32) -> (i32, i32) {
    %c0_i32 = arith.constant 0 : i32
    %c0_i32_0 = arith.constant 0 : i32
    %c0_i32_1 = arith.constant 0 : i32
    return %c0_i32, %c0_i32_0 : i32, i32
  }
  func.func @transform_11(%arg0: i32) -> (i32, i32) {
    %c0_i32 = arith.constant 0 : i32
    %c0_i32_0 = arith.constant 0 : i32
    return %arg0, %c0_i32 : i32, i32
  }
  func.func @transform_12(%arg0: i32) -> (i32, i32) {
    %c0_i32 = arith.constant 0 : i32
    %c0_i32_0 = arith.constant 0 : i32
    return %arg0, %c0_i32 : i32, i32
  }
}

</mosaic_0001>

<llo_original>
// kernel: tpu_custom_call.1
$region0: #{tpu_custom_call.1}
  #allocation0 [shape = 'u32[]', space=smem, size = 0x4, offset = 0x4, fixed_abs, tag = 'smem constant byte address 0x4 - core index']
  #allocation1 [shape = 'u32[144,128]{1,0:T(1,128)}', space=vmem, size = 0x12000, scoped, tag = 'internal scratch']
  %s0 = inlined_call_operand.hbm [shape: bf16[2,8,8], index: 0, kind: input, shape index: {}]
  %s1 = inlined_call_operand.hbm [shape: bf16[2,8,32], index: 1, kind: input, shape index: {}]
  %s2 = inlined_call_operand.vmem [shape: f32[2,8,1], index: 2, kind: input, shape index: {}]
  %s3 = inlined_call_operand.vmem [shape: bf16[32,32], index: 3, kind: input, shape index: {}]
  %s4 = inlined_call_operand.vmem [shape: f32[1,32], index: 4, kind: input, shape index: {}]
  %s5 = inlined_call_operand.vmem [shape: bf16[1,32,32], index: 5, kind: input, shape index: {}]
  %s6 = inlined_call_operand.vmem [shape: f32[1,1,32], index: 6, kind: input, shape index: {}]
  %s7 = inlined_call_operand.vmem [shape: f32[32,32], index: 7, kind: input, shape index: {}]
  %s8 = inlined_call_operand.vmem [shape: f32[1,32], index: 8, kind: input, shape index: {}]
  %s9 = inlined_call_operand.vmem [shape: f32[32,4], index: 9, kind: input, shape index: {}]
  %s10 = inlined_call_operand.vmem [shape: f32[1,4], index: 10, kind: input, shape index: {}]
  %s11 = inlined_call_operand.hbm [shape: f32[2,4], index: 11, kind: output, shape index: {0}]
  %s12 = inlined_call_operand.hbm [shape: f32[2,32], index: 12, kind: output, shape index: {1}]
  %13 = xla_tuple %s11, %s12
  %s14 = sld [smem:[#allocation0]]
  $region70: #{tpu_custom_call.1} parent=0
    _
  %s16 = ssub.s32 1, %s14
  %s17 = scalar_select 0, %s16, %s14
  $region1: #{tpu_custom_call.1} parent=0
    #allocation2 [shape = 'u8[4096]{0}', space=vmem, size = 0x1000, scoped, tag = 'input window, operand 0, single buffered']
    #allocation3 [shape = 's32[1]{0}', space=sflag, size = 0x4, scoped, tag = 'scoped memory for tpu_custom_call.1']
    #allocation4 [shape = 's32[1]{0}', space=sflag, size = 0x4, scoped, tag = 'scoped memory for tpu_custom_call.1']
    #allocation5 [shape = 'u8[4096]{0}', space=vmem, size = 0x1000, scoped, tag = 'input window, operand 1, single buffered']
    #allocation6 [shape = 's32[1]{0}', space=sflag, size = 0x4, scoped, tag = 'scoped memory for tpu_custom_call.1']
    #allocation7 [shape = 'u8[1024]{0}', space=vmem, size = 0x400, scoped, tag = 'output window, operand 0, single buffered']
    #allocation8 [shape = 'u8[1024]{0}', space=vmem, size = 0x400, scoped, tag = 'output window, operand 1, single buffered']
    #allocation9 [shape = 's32[1]{0}', space=sflag, size = 0x4, scoped, tag = 'scoped memory for tpu_custom_call.1']
    %18 = vsyncpa [#allocation3], 0
    %19 = vsyncpa [#allocation6], 0
    %20 = vsyncpa [#allocation4], 0
    %21 = vsyncpa [#allocation9], 0
    // Predicated region
    $region2: #{tpu_custom_call.1} parent=1 // pred_check
      _
    $region3: #{tpu_custom_call.1} parent=1 // pred_check_branch
      %23 = sbr.rel (0) target = $region5
    $region4: #{tpu_custom_call.1} parent=1 // pred_region
      %s25 = ssub.s32 128, 128
      %26 = vsyncadd [#allocation3], %s25
      %s27 = sshll.u32 [#allocation2], 4
      %s28 = int_to_ptr.vmem [resolvable:$true] %s27
      %33 = dma.hbm_to_vmem [thread:$0]  %s0, 128, %s28, [#allocation3], 64, 64, 4
    $region5: #{tpu_custom_call.1} parent=1 // pred_fallthru
      _
    // Predicated region
    $region6: #{tpu_custom_call.1} parent=1 // pred_check
      _
    $region7: #{tpu_custom_call.1} parent=1 // pred_check_branch
      %35 = sbr.rel (0) target = $region9
    $region8: #{tpu_custom_call.1} parent=1 // pred_region
      %s37 = ssub.s32 128, 128
      %38 = vsyncadd [#allocation6], %s37
      %s39 = sshll.u32 [#allocation5], 4
      %s40 = int_to_ptr.vmem [resolvable:$true] %s39
      %45 = dma.hbm_to_vmem [thread:$0]  %s1, 128, %s40, [#allocation6], 64, 64, 4
    $region9: #{tpu_custom_call.1} parent=1 // pred_fallthru
      _
    // Predicated region
    $region10: #{tpu_custom_call.1} parent=1 // pred_check
      _
    $region11: #{tpu_custom_call.1} parent=1 // pred_check_branch
      %47 = sbr.rel (0) target = $region13
    $region12: #{tpu_custom_call.1} parent=1 // pred_region
      _
    $region13: #{tpu_custom_call.1} parent=1 // pred_fallthru
      _
    // Predicated region
    $region14: #{tpu_custom_call.1} parent=1 // pred_check
      _
    $region15: #{tpu_custom_call.1} parent=1 // pred_check_branch
      %49 = sbr.rel (0) target = $region17
    $region16: #{tpu_custom_call.1} parent=1 // pred_region
      _
    $region17: #{tpu_custom_call.1} parent=1 // pred_fallthru
      _
    // Predicated region
    $region18: #{tpu_custom_call.1} parent=1 // pred_check
      _
    $region19: #{tpu_custom_call.1} parent=1 // pred_check_branch
      %51 = sbr.rel (0) target = $region21
    $region20: #{tpu_custom_call.1} parent=1 // pred_region
      _
    $region21: #{tpu_custom_call.1} parent=1 // pred_fallthru
      _
    // Predicated region
    $region22: #{tpu_custom_call.1} parent=1 // pred_check
      _
    $region23: #{tpu_custom_call.1} parent=1 // pred_check_branch
      %53 = sbr.rel (0) target = $region25
    $region24: #{tpu_custom_call.1} parent=1 // pred_region
      _
    $region25: #{tpu_custom_call.1} parent=1 // pred_fallthru
      _
    // Predicated region
    $region26: #{tpu_custom_call.1} parent=1 // pred_check
      _
    $region27: #{tpu_custom_call.1} parent=1 // pred_check_branch
      %55 = sbr.rel (0) target = $region29
    $region28: #{tpu_custom_call.1} parent=1 // pred_region
      _
    $region29: #{tpu_custom_call.1} parent=1 // pred_fallthru
      _
    // Predicated region
    $region30: #{tpu_custom_call.1} parent=1 // pred_check
      _
    $region31: #{tpu_custom_call.1} parent=1 // pred_check_branch
      %57 = sbr.rel (0) target = $region33
    $region32: #{tpu_custom_call.1} parent=1 // pred_region
      _
    $region33: #{tpu_custom_call.1} parent=1 // pred_fallthru
      _
    // Predicated region
    $region34: #{tpu_custom_call.1} parent=1 // pred_check
      _
    $region35: #{tpu_custom_call.1} parent=1 // pred_check_branch
      %59 = sbr.rel (0) target = $region37
    $region36: #{tpu_custom_call.1} parent=1 // pred_region
      _
    $region37: #{tpu_custom_call.1} parent=1 // pred_fallthru
      _
    // Predicated region
    $region38: #{tpu_custom_call.1} parent=1 // pred_check
      _
    $region39: #{tpu_custom_call.1} parent=1 // pred_check_branch
      %61 = sbr.rel (0) target = $region41
    $region40: #{tpu_custom_call.1} parent=1 // pred_region
      _
    $region41: #{tpu_custom_call.1} parent=1 // pred_fallthru
      _
    // Predicated region
    $region42: #{tpu_custom_call.1} parent=1 // pred_check
      _
    $region43: #{tpu_custom_call.1} parent=1 // pred_check_branch
      %63 = sbr.rel (0) target = $region45
    $region44: #{tpu_custom_call.1} parent=1 // pred_region
      _
    $region45: #{tpu_custom_call.1} parent=1 // pred_fallthru
      _
    // Predicated region
    $region46: #{tpu_custom_call.1} parent=1 // pred_check
      _
    $region47: #{tpu_custom_call.1} parent=1 // pred_check_branch
      %65 = sbr.rel (0) target = $region49
    $region48: #{tpu_custom_call.1} parent=1 // pred_region
      %66 = dma.done [#allocation3], 128
    $region49: #{tpu_custom_call.1} parent=1 // pred_fallthru
      _
    // Predicated region
    $region50: #{tpu_custom_call.1} parent=1 // pred_check
      _
    $region51: #{tpu_custom_call.1} parent=1 // pred_check_branch
      %68 = sbr.rel (0) target = $region53
    $region52: #{tpu_custom_call.1} parent=1 // pred_region
      %69 = dma.done [#allocation6], 128
    $region53: #{tpu_custom_call.1} parent=1 // pred_fallthru
      _
    %v71 = vld [vmem:[#allocation2] sm:$0xf]
    %v72 = vld [vmem:[#allocation2 + $0x4] sm:$0xf]
    %v73 = vunpack.c.l.bf16 %v71
    %v74 = vunpack.c.l.bf16 %v72
    %vm75 = vcmask 64512
    %v76 = vsel %vm75, %v73, 0.0
    %77 = vadd.xlane.f32.xlu0 %v76
    %v78 = vpop.xlane.xlu0 %77
    %v79 = vsel %vm75, %v74, 0.0
    %80 = vadd.xlane.f32.xlu0 %v79
    %v81 = vpop.xlane.xlu0 %80
    %v82 = vadd.f32 %v78, 1.0
    %v83 = vadd.f32 %v81, 1.0
    %v84 = vrcp.pop %v82
    %v85 = vrcp.pop %v83
    %v86 = vld [vmem:[#allocation5] sm:$0xf]
    %v87 = vld [vmem:[#allocation5 + $0x4] sm:$0xf]
    %v88 = vld [vmem:[%s3] sm:$0xf]
    %v89 = vld [vmem:[%s3 + $0x4] sm:$0xf]
    %v90 = vld [vmem:[%s3 + $0x8] sm:$0xf]
    %v91 = vld [vmem:[%s3 + $0xc] sm:$0xf]
    %v92 = vld [vmem:[%s4] sm:$0x1]
    %v95 = vunpack.c.l.b16 %v86
    %v96 = vunpack.c.l.b16 %v87
    %v97 = vpack.c.b16 %v96, %v95
    %v102 = vunpack.c.l.b16 %v88
    %v103 = vunpack.c.l.b16 %v89
    %v104 = vunpack.c.l.b16 %v90
    %v105 = vunpack.c.l.b16 %v91
    %v106 = vpack.c.b16 %v103, %v102
    %v107 = vpack.c.b16 %v105, %v104
    %vm110 = vcmask 261120
    %v112 = vsel %vm110, %v97, 0
    %114 = vmatprep.subr.bf16.mxu0 0
    %115 = vmatpush1.bf16.msra.mxu0 %v106
    %116 = vmatprep.subr.bf16.mxu0 0
    %117 = vmatpush1.bf16.msra.mxu0 %v107
    %118 = vmatprep.subr.bf16.mxu0 0
    %119 = vmatpush1.bf16.msra.mxu0 0
    %120 = vmatprep.subr.bf16.mxu0 0
    %121 = vmatpush1.bf16.msra.mxu0 0
    %122 = vmatprep.subr.bf16.mxu0 0
    %123 = vmatpush1.bf16.msra.mxu0 0
    %124 = vmatprep.subr.bf16.mxu0 0
    %125 = vmatpush1.bf16.msra.mxu0 0
    %126 = vmatprep.subr.bf16.mxu0 0
    %127 = vmatpush1.bf16.msra.mxu0 0
    %128 = vmatprep.subr.bf16.mxu0 0
    %129 = vmatpush1.bf16.msra.mxu0 0
    %130 = vmatprep.subr.bf16.mxu0 0
    %131 = vmatpush1.bf16.msra.mxu0 0
    %132 = vmatprep.subr.bf16.mxu0 0
    %133 = vmatpush1.bf16.msra.mxu0 0
    %134 = vmatprep.subr.bf16.mxu0 0
    %135 = vmatpush1.bf16.msra.mxu0 0
    %136 = vmatprep.subr.bf16.mxu0 0
    %137 = vmatpush1.bf16.msra.mxu0 0
    %138 = vmatprep.subr.bf16.mxu0 0
    %139 = vmatpush1.bf16.msra.mxu0 0
    %140 = vmatprep.subr.bf16.mxu0 0
    %141 = vmatpush1.bf16.msra.mxu0 0
    %142 = vmatprep.subr.bf16.mxu0 0
    %143 = vmatpush1.bf16.msra.mxu0 0
    %144 = vmatprep.subr.bf16.mxu0 0
    %145 = vmatpush1.bf16.msra.mxu0 0
    %146 = vmatprep.mubr.bf16.mxu0 0
    %147 = vmatmul.mubr.bf16.gmra.mrb[0].mxu0 %v112
    %v148 = vpop.f32.mrb[0].mxu0
    %v149 = vadd.f32 0.0, %v148
    %v150 = vpop.f32.mrb[0].mxu0
    %v151 = vpop.f32.mrb[0].mxu0
    %v152 = vadd.f32 0.0, %v151
    %v153 = vpop.f32.mrb[0].mxu0
    %154 = vdwg.mxu0
    %v155 = vpack.c.bf16 %v149, %v149
    %v156 = vpack.c.bf16 %v152, %v152
    %v158 = vsel %vm75, %v71, 0
    %vm160 = vcmask 1043456
    %v162 = vsel %vm160, %v155, 0
    %164 = vmatprep.subr.bf16.mxu0 0
    %165 = vmatpush1.bf16.msra.mxu0 %v162
    %166 = vmatprep.subr.bf16.mxu0 0
    %167 = vmatpush1.bf16.msra.mxu0 0
    %168 = vmatprep.subr.bf16.mxu0 0
    %169 = vmatpush1.bf16.msra.mxu0 0
    %170 = vmatprep.subr.bf16.mxu0 0
    %171 = vmatpush1.bf16.msra.mxu0 0
    %172 = vmatprep.subr.bf16.mxu0 0
    %173 = vmatpush1.bf16.msra.mxu0 0
    %174 = vmatprep.subr.bf16.mxu0 0
    %175 = vmatpush1.bf16.msra.mxu0 0
    %176 = vmatprep.subr.bf16.mxu0 0
    %177 = vmatpush1.bf16.msra.mxu0 0
    %178 = vmatprep.subr.bf16.mxu0 0
    %179 = vmatpush1.bf16.msra.mxu0 0
    %180 = vmatprep.subr.bf16.mxu0 0
    %181 = vmatpush1.bf16.msra.mxu0 0
    %182 = vmatprep.subr.bf16.mxu0 0
    %183 = vmatpush1.bf16.msra.mxu0 0
    %184 = vmatprep.subr.bf16.mxu0 0
    %185 = vmatpush1.bf16.msra.mxu0 0
    %186 = vmatprep.subr.bf16.mxu0 0
    %187 = vmatpush1.bf16.msra.mxu0 0
    %188 = vmatprep.subr.bf16.mxu0 0
    %189 = vmatpush1.bf16.msra.mxu0 0
    %190 = vmatprep.subr.bf16.mxu0 0
    %191 = vmatpush1.bf16.msra.mxu0 0
    %192 = vmatprep.subr.bf16.mxu0 0
    %193 = vmatpush1.bf16.msra.mxu0 0
    %194 = vmatprep.subr.bf16.mxu0 0
    %195 = vmatpush1.bf16.msra.mxu0 0
    %196 = vmatprep.mubr.bf16.mxu0 0
    %197 = vmatmul.mubr.bf16.gmra.mrb[0].mxu0 %v158
    %v198 = vpop.f32.mrb[0].mxu0
    %v199 = vadd.f32 %v149, %v198
    %v200 = vpop.f32.mrb[0].mxu0
    %v201 = vpop.f32.mrb[0].mxu0
    %v202 = vpop.f32.mrb[0].mxu0
    %203 = vdwg.mxu0
    %v205 = vsel %vm75, %v72, 0
    %v208 = vsel %vm160, %v156, 0
    %210 = vmatprep.subr.bf16.mxu0 0
    %211 = vmatpush1.bf16.msra.mxu0 %v208
    %212 = vmatprep.subr.bf16.mxu0 0
    %213 = vmatpush1.bf16.msra.mxu0 0
    %214 = vmatprep.subr.bf16.mxu0 0
    %215 = vmatpush1.bf16.msra.mxu0 0
    %216 = vmatprep.subr.bf16.mxu0 0
    %217 = vmatpush1.bf16.msra.mxu0 0
    %218 = vmatprep.subr.bf16.mxu0 0
    %219 = vmatpush1.bf16.msra.mxu0 0
    %220 = vmatprep.subr.bf16.mxu0 0
    %221 = vmatpush1.bf16.msra.mxu0 0
    %222 = vmatprep.subr.bf16.mxu0 0
    %223 = vmatpush1.bf16.msra.mxu0 0
    %224 = vmatprep.subr.bf16.mxu0 0
    %225 = vmatpush1.bf16.msra.mxu0 0
    %226 = vmatprep.subr.bf16.mxu0 0
    %227 = vmatpush1.bf16.msra.mxu0 0
    %228 = vmatprep.subr.bf16.mxu0 0
    %229 = vmatpush1.bf16.msra.mxu0 0
    %230 = vmatprep.subr.bf16.mxu0 0
    %231 = vmatpush1.bf16.msra.mxu0 0
    %232 = vmatprep.subr.bf16.mxu0 0
    %233 = vmatpush1.bf16.msra.mxu0 0
    %234 = vmatprep.subr.bf16.mxu0 0
    %235 = vmatpush1.bf16.msra.mxu0 0
    %236 = vmatprep.subr.bf16.mxu0 0
    %237 = vmatpush1.bf16.msra.mxu0 0
    %238 = vmatprep.subr.bf16.mxu0 0
    %239 = vmatpush1.bf16.msra.mxu0 0
    %240 = vmatprep.subr.bf16.mxu0 0
    %241 = vmatpush1.bf16.msra.mxu0 0
    %242 = vmatprep.mubr.bf16.mxu0 0
    %243 = vmatmul.mubr.bf16.gmra.mrb[0].mxu0 %v205
    %v244 = vpop.f32.mrb[0].mxu0
    %v245 = vadd.f32 %v152, %v244
    %v246 = vpop.f32.mrb[0].mxu0
    %v247 = vpop.f32.mrb[0].mxu0
    %v248 = vpop.f32.mrb[0].mxu0
    %249 = vdwg.mxu0
    %v250 = vmul.f32 %v92, 2.0
    %v252 = vlaneseq
    %v253 = vshrl.u32 %v252, 7
    %v254 = vsub.s32 0, %v253
    %v255 = vrot.slane %v250, %v254
    %v257 = vadd.f32 %v199, %v255
    %v258 = vadd.f32 %v245, %v255
    %v259 = vmul.f32 %v257, %v84
    %v260 = vmul.f32 %v258, %v85
    %v261 = vmax.f32 %v259, 0.0
    %v262 = vmax.f32 %v260, 0.0
    %v263 = vpack.c.bf16 %v261, %v261
    %v264 = vpack.c.bf16 %v262, %v262
    %v265 = vld [vmem:[%s5] sm:$0xf]
    %v266 = vld [vmem:[%s5 + $0x4] sm:$0xf]
    %v267 = vld [vmem:[%s5 + $0x8] sm:$0xf]
    %v268 = vld [vmem:[%s5 + $0xc] sm:$0xf]
    %v269 = vld [vmem:[%s6] sm:$0x1]
    %v272 = vunpack.c.l.b16 %v263
    %v273 = vunpack.c.l.b16 %v264
    %v274 = vpack.c.b16 %v273, %v272
    %v279 = vunpack.c.l.b16 %v265
    %v280 = vunpack.c.l.b16 %v266
    %v281 = vunpack.c.l.b16 %v267
    %v282 = vunpack.c.l.b16 %v268
    %v283 = vpack.c.b16 %v280, %v279
    %v284 = vpack.c.b16 %v282, %v281
    %v288 = vsel %vm110, %v274, 0
    %290 = vmatprep.subr.bf16.mxu0 0
    %291 = vmatpush1.bf16.msra.mxu0 %v283
    %292 = vmatprep.subr.bf16.mxu0 0
    %293 = vmatpush1.bf16.msra.mxu0 %v284
    %294 = vmatprep.subr.bf16.mxu0 0
    %295 = vmatpush1.bf16.msra.mxu0 0
    %296 = vmatprep.subr.bf16.mxu0 0
    %297 = vmatpush1.bf16.msra.mxu0 0
    %298 = vmatprep.subr.bf16.mxu0 0
    %299 = vmatpush1.bf16.msra.mxu0 0
    %300 = vmatprep.subr.bf16.mxu0 0
    %301 = vmatpush1.bf16.msra.mxu0 0
    %302 = vmatprep.subr.bf16.mxu0 0
    %303 = vmatpush1.bf16.msra.mxu0 0
    %304 = vmatprep.subr.bf16.mxu0 0
    %305 = vmatpush1.bf16.msra.mxu0 0
    %306 = vmatprep.subr.bf16.mxu0 0
    %307 = vmatpush1.bf16.msra.mxu0 0
    %308 = vmatprep.subr.bf16.mxu0 0
    %309 = vmatpush1.bf16.msra.mxu0 0
    %310 = vmatprep.subr.bf16.mxu0 0
    %311 = vmatpush1.bf16.msra.mxu0 0
    %312 = vmatprep.subr.bf16.mxu0 0
    %313 = vmatpush1.bf16.msra.mxu0 0
    %314 = vmatprep.subr.bf16.mxu0 0
    %315 = vmatpush1.bf16.msra.mxu0 0
    %316 = vmatprep.subr.bf16.mxu0 0
    %317 = vmatpush1.bf16.msra.mxu0 0
    %318 = vmatprep.subr.bf16.mxu0 0
    %319 = vmatpush1.bf16.msra.mxu0 0
    %320 = vmatprep.subr.bf16.mxu0 0
    %321 = vmatpush1.bf16.msra.mxu0 0
    %322 = vmatprep.mubr.bf16.mxu0 0
    %323 = vmatmul.mubr.bf16.gmra.mrb[0].mxu0 %v288
    %v324 = vpop.f32.mrb[0].mxu0
    %v325 = vadd.f32 0.0, %v324
    %v326 = vpop.f32.mrb[0].mxu0
    %v327 = vpop.f32.mrb[0].mxu0
    %v328 = vadd.f32 0.0, %v327
    %v329 = vpop.f32.mrb[0].mxu0
    %330 = vdwg.mxu0
    %v331 = vpack.c.bf16 %v325, %v325
    %v332 = vpack.c.bf16 %v328, %v328
    %v334 = vsel %vm160, %v331, 0
    %336 = vmatprep.subr.bf16.mxu0 0
    %337 = vmatpush1.bf16.msra.mxu0 %v334
    %338 = vmatprep.subr.bf16.mxu0 0
    %339 = vmatpush1.bf16.msra.mxu0 0
    %340 = vmatprep.subr.bf16.mxu0 0
    %341 = vmatpush1.bf16.msra.mxu0 0
    %342 = vmatprep.subr.bf16.mxu0 0
    %343 = vmatpush1.bf16.msra.mxu0 0
    %344 = vmatprep.subr.bf16.mxu0 0
    %345 = vmatpush1.bf16.msra.mxu0 0
    %346 = vmatprep.subr.bf16.mxu0 0
    %347 = vmatpush1.bf16.msra.mxu0 0
    %348 = vmatprep.subr.bf16.mxu0 0
    %349 = vmatpush1.bf16.msra.mxu0 0
    %350 = vmatprep.subr.bf16.mxu0 0
    %351 = vmatpush1.bf16.msra.mxu0 0
    %352 = vmatprep.subr.bf16.mxu0 0
    %353 = vmatpush1.bf16.msra.mxu0 0
    %354 = vmatprep.subr.bf16.mxu0 0
    %355 = vmatpush1.bf16.msra.mxu0 0
    %356 = vmatprep.subr.bf16.mxu0 0
    %357 = vmatpush1.bf16.msra.mxu0 0
    %358 = vmatprep.subr.bf16.mxu0 0
    %359 = vmatpush1.bf16.msra.mxu0 0
    %360 = vmatprep.subr.bf16.mxu0 0
    %361 = vmatpush1.bf16.msra.mxu0 0
    %362 = vmatprep.subr.bf16.mxu0 0
    %363 = vmatpush1.bf16.msra.mxu0 0
    %364 = vmatprep.subr.bf16.mxu0 0
    %365 = vmatpush1.bf16.msra.mxu0 0
    %366 = vmatprep.subr.bf16.mxu0 0
    %367 = vmatpush1.bf16.msra.mxu0 0
    %368 = vmatprep.mubr.bf16.mxu0 0
    %369 = vmatmul.mubr.bf16.gmra.mrb[0].mxu0 %v158
    %v370 = vpop.f32.mrb[0].mxu0
    %v371 = vadd.f32 %v325, %v370
    %v372 = vpop.f32.mrb[0].mxu0
    %v373 = vpop.f32.mrb[0].mxu0
    %v374 = vpop.f32.mrb[0].mxu0
    %375 = vdwg.mxu0
    %v377 = vsel %vm160, %v332, 0
    %379 = vmatprep.subr.bf16.mxu0 0
    %380 = vmatpush1.bf16.msra.mxu0 %v377
    %381 = vmatprep.subr.bf16.mxu0 0
    %382 = vmatpush1.bf16.msra.mxu0 0
    %383 = vmatprep.subr.bf16.mxu0 0
    %384 = vmatpush1.bf16.msra.mxu0 0
    %385 = vmatprep.subr.bf16.mxu0 0
    %386 = vmatpush1.bf16.msra.mxu0 0
    %387 = vmatprep.subr.bf16.mxu0 0
    %388 = vmatpush1.bf16.msra.mxu0 0
    %389 = vmatprep.subr.bf16.mxu0 0
    %390 = vmatpush1.bf16.msra.mxu0 0
    %391 = vmatprep.subr.bf16.mxu0 0
    %392 = vmatpush1.bf16.msra.mxu0 0
    %393 = vmatprep.subr.bf16.mxu0 0
    %394 = vmatpush1.bf16.msra.mxu0 0
    %395 = vmatprep.subr.bf16.mxu0 0
    %396 = vmatpush1.bf16.msra.mxu0 0
    %397 = vmatprep.subr.bf16.mxu0 0
    %398 = vmatpush1.bf16.msra.mxu0 0
    %399 = vmatprep.subr.bf16.mxu0 0
    %400 = vmatpush1.bf16.msra.mxu0 0
    %401 = vmatprep.subr.bf16.mxu0 0
    %402 = vmatpush1.bf16.msra.mxu0 0
    %403 = vmatprep.subr.bf16.mxu0 0
    %404 = vmatpush1.bf16.msra.mxu0 0
    %405 = vmatprep.subr.bf16.mxu0 0
    %406 = vmatpush1.bf16.msra.mxu0 0
    %407 = vmatprep.subr.bf16.mxu0 0
    %408 = vmatpush1.bf16.msra.mxu0 0
    %409 = vmatprep.subr.bf16.mxu0 0
    %410 = vmatpush1.bf16.msra.mxu0 0
    %411 = vmatprep.mubr.bf16.mxu0 0
    %412 = vmatmul.mubr.bf16.gmra.mrb[0].mxu0 %v205
    %v413 = vpop.f32.mrb[0].mxu0
    %v414 = vadd.f32 %v328, %v413
    %v415 = vpop.f32.mrb[0].mxu0
    %v416 = vpop.f32.mrb[0].mxu0
    %v417 = vpop.f32.mrb[0].mxu0
    %418 = vdwg.mxu0
    %v419 = vmul.f32 %v269, 2.0
    %v421 = vlaneseq
    %v422 = vshrl.u32 %v421, 7
    %v423 = vsub.s32 0, %v422
    %v424 = vrot.slane %v419, %v423
    %v426 = vadd.f32 %v371, %v424
    %v427 = vadd.f32 %v414, %v424
    %v428 = vmul.f32 %v426, %v84
    %v429 = vmul.f32 %v427, %v85
    %v430 = vmax.f32 %v428, 0.0
    %v431 = vmax.f32 %v429, 0.0
    %v432 = vld [vmem:[%s2] sm:$0xff]
    %v433 = vld [vmem:[%s2 + $0x8] sm:$0xff]
    %435 = vset.pattern.permute.xlu0 0
    %436 = vperm.xlu0 %435, %v432
    %v437 = vpop.permute.xlu0 %436
    %440 = vset.pattern.permute.xlu0 0
    %441 = vperm.xlu0 %440, %v433
    %v442 = vpop.permute.xlu0 %441
    %v444 = vadd.f32 %v430, %v437
    %v445 = vadd.f32 %v431, %v442
    %v446 = vsel %vm110, %v444, -inf
    %v447 = vrot.slane %v446, 4
    %v448 = vmax.f32 %v446, %v447
    %v449 = vrot.slane %v448, 2
    %v450 = vmax.f32 %v448, %v449
    %v451 = vrot.slane %v450, 1
    %v452 = vmax.f32 %v450, %v451
    %v453 = vsel %vm110, %v445, -inf
    %v454 = vrot.slane %v453, 4
    %v455 = vmax.f32 %v453, %v454
    %v456 = vrot.slane %v455, 2
    %v457 = vmax.f32 %v455, %v456
    %v458 = vrot.slane %v457, 1
    %v459 = vmax.f32 %v457, %v458
    %vm462 = vcmask 1041409
    %v463 = vsel %vm462, %v459, %v452
    %vm465 = vcmask 254976
    %466 = vst.msk [vmem:[#allocation8] sm:$0x3] %vm465, %v463
    %v467 = vld [vmem:[%s7] sm:$0xff]
    %v468 = vld [vmem:[%s7 + $0x8] sm:$0xff]
    %v469 = vld [vmem:[%s7 + $0x10] sm:$0xff]
    %v470 = vld [vmem:[%s7 + $0x18] sm:$0xff]
    %v471 = vld [vmem:[%s8] sm:$0x1]
    %v473 = vlaneseq
    %v474 = vshrl.u32 %v473, 7
    %v475 = vsub.s32 0, %v474
    %v476 = vrot.slane %v471, %v475
    %v478 = vsel %vm110, %v463, 0
    %480 = vmatprep.subr.mxu0 0.0
    %481 = vmatpush1.msra.mxu0 %v467
    %482 = vmatprep.subr.mxu0 0.0
    %483 = vmatpush1.msra.mxu0 %v468
    %484 = vmatprep.subr.mxu0 0.0
    %485 = vmatpush1.msra.mxu0 %v469
    %486 = vmatprep.subr.mxu0 0.0
    %487 = vmatpush1.msra.mxu0 %v470
    %488 = vmatprep.subr.mxu0 0.0
    %489 = vmatpush1.msra.mxu0 0.0
    %490 = vmatprep.subr.mxu0 0.0
    %491 = vmatpush1.msra.mxu0 0.0
    %492 = vmatprep.subr.mxu0 0.0
    %493 = vmatpush1.msra.mxu0 0.0
    %494 = vmatprep.subr.mxu0 0.0
    %495 = vmatpush1.msra.mxu0 0.0
    %496 = vmatprep.subr.mxu0 0.0
    %497 = vmatpush1.msra.mxu0 0.0
    %498 = vmatprep.subr.mxu0 0.0
    %499 = vmatpush1.msra.mxu0 0.0
    %500 = vmatprep.subr.mxu0 0.0
    %501 = vmatpush1.msra.mxu0 0.0
    %502 = vmatprep.subr.mxu0 0.0
    %503 = vmatpush1.msra.mxu0 0.0
    %504 = vmatprep.subr.mxu0 0.0
    %505 = vmatpush1.msra.mxu0 0.0
    %506 = vmatprep.subr.mxu0 0.0
    %507 = vmatpush1.msra.mxu0 0.0
    %508 = vmatprep.subr.mxu0 0.0
    %509 = vmatpush1.msra.mxu0 0.0
    %510 = vmatprep.subr.mxu0 0.0
    %511 = vmatpush1.msra.mxu0 0.0
    %512 = vmatprep.subr.mxu0 0.0
    %513 = vmatpush1.msra.mxu0 0.0
    %514 = vmatprep.subr.mxu0 0.0
    %515 = vmatpush1.msra.mxu0 0.0
    %516 = vmatprep.subr.mxu0 0.0
    %517 = vmatpush1.msra.mxu0 0.0
    %518 = vmatprep.subr.mxu0 0.0
    %519 = vmatpush1.msra.mxu0 0.0
    %520 = vmatprep.subr.mxu0 0.0
    %521 = vmatpush1.msra.mxu0 0.0
    %522 = vmatprep.subr.mxu0 0.0
    %523 = vmatpush1.msra.mxu0 0.0
    %524 = vmatprep.subr.mxu0 0.0
    %525 = vmatpush1.msra.mxu0 0.0
    %526 = vmatprep.subr.mxu0 0.0
    %527 = vmatpush1.msra.mxu0 0.0
    %528 = vmatprep.subr.mxu0 0.0
    %529 = vmatpush1.msra.mxu0 0.0
    %530 = vmatprep.subr.mxu0 0.0
    %531 = vmatpush1.msra.mxu0 0.0
    %532 = vmatprep.subr.mxu0 0.0
    %533 = vmatpush1.msra.mxu0 0.0
    %534 = vmatprep.subr.mxu0 0.0
    %535 = vmatpush1.msra.mxu0 0.0
    %536 = vmatprep.subr.mxu0 0.0
    %537 = vmatpush1.msra.mxu0 0.0
    %538 = vmatprep.subr.mxu0 0.0
    %539 = vmatpush1.msra.mxu0 0.0
    %540 = vmatprep.subr.mxu0 0.0
    %541 = vmatpush1.msra.mxu0 0.0
    %542 = vmatprep.subr.mxu0 0.0
    %543 = vmatpush1.msra.mxu0 0.0
    %544 = vmatprep.mubr.f32.mxu0 0.0
    %545 = vmatmul.mubr.f32.gmra.mrb[0].mxu0 %v478
    %v546 = vpop.f32.mrb[0].mxu0
    %v547 = vadd.f32 %v476, %v546
    %v548 = vpop.f32.mrb[0].mxu0
    %549 = vdwg.mxu0
    %v550 = vmax.f32 %v547, 0.0
    %v551 = vld [vmem:[%s9] sm:$0xff]
    %v552 = vld [vmem:[%s9 + $0x8] sm:$0xff]
    %v553 = vld [vmem:[%s9 + $0x10] sm:$0xff]
    %v554 = vld [vmem:[%s9 + $0x18] sm:$0xff]
    %v555 = vld [vmem:[%s10] sm:$0x1]
    %v557 = vlaneseq
    %v558 = vshrl.u32 %v557, 7
    %v559 = vsub.s32 0, %v558
    %v560 = vrot.slane %v555, %v559
    %v563 = vsel %vm110, %v550, 0
    %565 = vmatprep.subr.mxu0 0.0
    %566 = vmatpush1.msra.mxu0 %v551
    %567 = vmatprep.subr.mxu0 0.0
    %568 = vmatpush1.msra.mxu0 %v552
    %569 = vmatprep.subr.mxu0 0.0
    %570 = vmatpush1.msra.mxu0 %v553
    %571 = vmatprep.subr.mxu0 0.0
    %572 = vmatpush1.msra.mxu0 %v554
    %573 = vmatprep.subr.mxu0 0.0
    %574 = vmatpush1.msra.mxu0 0.0
    %575 = vmatprep.subr.mxu0 0.0
    %576 = vmatpush1.msra.mxu0 0.0
    %577 = vmatprep.subr.mxu0 0.0
    %578 = vmatpush1.msra.mxu0 0.0
    %579 = vmatprep.subr.mxu0 0.0
    %580 = vmatpush1.msra.mxu0 0.0
    %581 = vmatprep.subr.mxu0 0.0
    %582 = vmatpush1.msra.mxu0 0.0
    %583 = vmatprep.subr.mxu0 0.0
    %584 = vmatpush1.msra.mxu0 0.0
    %585 = vmatprep.subr.mxu0 0.0
    %586 = vmatpush1.msra.mxu0 0.0
    %587 = vmatprep.subr.mxu0 0.0
    %588 = vmatpush1.msra.mxu0 0.0
    %589 = vmatprep.subr.mxu0 0.0
    %590 = vmatpush1.msra.mxu0 0.0
    %591 = vmatprep.subr.mxu0 0.0
    %592 = vmatpush1.msra.mxu0 0.0
    %593 = vmatprep.subr.mxu0 0.0
    %594 = vmatpush1.msra.mxu0 0.0
    %595 = vmatprep.subr.mxu0 0.0
    %596 = vmatpush1.msra.mxu0 0.0
    %597 = vmatprep.subr.mxu0 0.0
    %598 = vmatpush1.msra.mxu0 0.0
    %599 = vmatprep.subr.mxu0 0.0
    %600 = vmatpush1.msra.mxu0 0.0
    %601 = vmatprep.subr.mxu0 0.0
    %602 = vmatpush1.msra.mxu0 0.0
    %603 = vmatprep.subr.mxu0 0.0
    %604 = vmatpush1.msra.mxu0 0.0
    %605 = vmatprep.subr.mxu0 0.0
    %606 = vmatpush1.msra.mxu0 0.0
    %607 = vmatprep.subr.mxu0 0.0
    %608 = vmatpush1.msra.mxu0 0.0
    %609 = vmatprep.subr.mxu0 0.0
    %610 = vmatpush1.msra.mxu0 0.0
    %611 = vmatprep.subr.mxu0 0.0
    %612 = vmatpush1.msra.mxu0 0.0
    %613 = vmatprep.subr.mxu0 0.0
    %614 = vmatpush1.msra.mxu0 0.0
    %615 = vmatprep.subr.mxu0 0.0
    %616 = vmatpush1.msra.mxu0 0.0
    %617 = vmatprep.subr.mxu0 0.0
    %618 = vmatpush1.msra.mxu0 0.0
    %619 = vmatprep.subr.mxu0 0.0
    %620 = vmatpush1.msra.mxu0 0.0
    %621 = vmatprep.subr.mxu0 0.0
    %622 = vmatpush1.msra.mxu0 0.0
    %623 = vmatprep.subr.mxu0 0.0
    %624 = vmatpush1.msra.mxu0 0.0
    %625 = vmatprep.subr.mxu0 0.0
    %626 = vmatpush1.msra.mxu0 0.0
    %627 = vmatprep.subr.mxu0 0.0
    %628 = vmatpush1.msra.mxu0 0.0
    %629 = vmatprep.mubr.f32.mxu0 0.0
    %630 = vmatmul.mubr.f32.gmra.mrb[0].mxu0 %v563
    %v631 = vpop.f32.mrb[0].mxu0
    %v632 = vadd.f32 %v560, %v631
    %v633 = vpop.f32.mrb[0].mxu0
    %634 = vdwg.mxu0
    %vm635 = vcmask 25600
    %636 = vst.msk [vmem:[#allocation7] sm:$0x3] %vm635, %v632
    // Predicated region
    $region54: #{tpu_custom_call.1} parent=1 // pred_check
      _
    $region55: #{tpu_custom_call.1} parent=1 // pred_check_branch
      %638 = sbr.rel (0) target = $region57
    $region56: #{tpu_custom_call.1} parent=1 // pred_region
      %s640 = ssub.s32 32, 32
      %641 = vsyncadd [#allocation4], %s640
      %s643 = sshll.u32 [#allocation7], 4
      %s644 = int_to_ptr.vmem [resolvable:$true] %s643
      %646 = dma.vmem_to_hbm [thread:$0]  %s644, 32, %s11, [#allocation4]
    $region57: #{tpu_custom_call.1} parent=1 // pred_fallthru
      _
    // Predicated region
    $region58: #{tpu_custom_call.1} parent=1 // pred_check
      _
    $region59: #{tpu_custom_call.1} parent=1 // pred_check_branch
      %648 = sbr.rel (0) target = $region61
    $region60: #{tpu_custom_call.1} parent=1 // pred_region
      %s650 = ssub.s32 32, 32
      %651 = vsyncadd [#allocation9], %s650
      %s653 = sshll.u32 [#allocation8], 4
      %s654 = int_to_ptr.vmem [resolvable:$true] %s653
      %656 = dma.vmem_to_hbm [thread:$0]  %s654, 32, %s12, [#allocation9]
    $region61: #{tpu_custom_call.1} parent=1 // pred_fallthru
      _
    // Predicated region
    $region62: #{tpu_custom_call.1} parent=1 // pred_check
      _
    $region63: #{tpu_custom_call.1} parent=1 // pred_check_branch
      %658 = sbr.rel (0) target = $region65
    $region64: #{tpu_custom_call.1} parent=1 // pred_region
      %659 = dma.done [#allocation4], 32
    $region65: #{tpu_custom_call.1} parent=1 // pred_fallthru
      _
    // Predicated region
    $region66: #{tpu_custom_call.1} parent=1 // pred_check
      _
    $region67: #{tpu_custom_call.1} parent=1 // pred_check_branch
      %661 = sbr.rel (0) target = $region69
    $region68: #{tpu_custom_call.1} parent=1 // pred_region
      %662 = dma.done [#allocation9], 32
    $region69: #{tpu_custom_call.1} parent=1 // pred_fallthru
      _
    %663 = vsyncpa [#allocation3], 1
    %664 = vsyncpa [#allocation6], 1
    %665 = vsyncpa [#allocation4], 1
    %666 = vsyncpa [#allocation9], 1

</llo_original>
